<compile_context>
chip_gen: v7x
topology: tpu7x:2x2x1
jax: 0.10.0
libtpu: 0.0.40
codegen_flags: <defaults>
</compile_context>

<pallas_src>
import numpy as np
import jax
import jax.numpy as jnp
from jax.experimental import pallas as pl
from jax.experimental.pallas import tpu as pltpu


def _fft_loss_kernel(x_ref, cwsw_ref, chsh_ref, out_ref):
    f32 = jnp.float32
    two, bblk, chans, H, W = x_ref.shape       # (2, Bblk, 3, H, W)
    P = two * bblk * chans                     # number of planes = 6 * Bblk
    PW = P * W
    half = PW // 2

    cwsw = cwsw_ref[...]                       # (W, 2W)  = [Cw | Sw]
    chsh = chsh_ref[...]                       # (2H, H)  = [Ch ; Sh]

    # (2, Bblk, 3, H, W) -> (P*H, W); free view when H % 8 == 0.
    x = x_ref[...].astype(f32).reshape(P * H, W)

    # Stage 1 (W-axis DFT), one fused matmul:
    #   pq[j*H:(j+1)*H, :W] = P_j = x_j @ Cw
    #   pq[j*H:(j+1)*H, W:] = Q_j = x_j @ Sw
    pq = jnp.dot(x, cwsw, preferred_element_type=f32)        # (P*H, 2W)

    # Restack sublane plane-blocks into lane blocks:
    #   lanes [0, PW)   -> cos parts P_0..P_{P-1}
    #   lanes [PW, 2PW) -> sin parts Q_0..Q_{P-1}
    # (Cheapest when H % 8 == 0 and W % 128 == 0; still correct otherwise.)
    y = jnp.concatenate(
        [pq[j * H:(j + 1) * H, :W] for j in range(P)]
        + [pq[j * H:(j + 1) * H, W:] for j in range(P)], axis=1)  # (H, 2PW)

    # Stage 2 (H-axis DFT), one fused matmul: uv[:H] = Ch @ y, uv[H:] = Sh @ y
    uv = jnp.dot(chsh, y, preferred_element_type=f32)        # (2H, 2PW)
    u = uv[:H]
    v = uv[H:]

    re = u[:, :PW] - v[:, PW:]                 # Ch@P - Sh@Q
    im = u[:, PW:] + v[:, :PW]                 # -(Im) = Ch@Q + Sh@P (sign irrelevant)
    mag = jnp.sqrt(re * re + im * im)          # (H, PW)

    # Planes [0, P/2) are pred, [P/2, P) are target (wrapper stacking order).
    d = mag[:, :half] - mag[:, half:]          # (H, PW/2)
    s = jnp.sum(d * d)

    # Lane/sublane-dense block of 1024 identical copies per grid step; the
    # wrapper folds the exact /1024 into the final scale.
    out_ref[...] = jnp.full(out_ref.shape, s, dtype=f32)


def _vmem_capacity_bytes():
    try:
        cap = getattr(pltpu.get_tpu_info(), "vmem_capacity_bytes", None)
        if cap:
            return int(cap)
    except Exception:
        pass
    return 64 * 1024 * 1024                    # conservative (v7x-sized) fallback


def fft_loss(pred, target, high_freq_weight=1.0):
    B, C, H, W = pred.shape
    assert C == 3 and target.shape[1] == 3, "Input must be RGB images."
    assert target.shape == pred.shape

    # |FFT2(x^T)| = |FFT2(x)|^T, so the loss is invariant under transposing
    # the images; put the larger dimension in the (cheaper) stage-1 transform.
    if H > W:
        pred = jnp.swapaxes(pred, 2, 3)
        target = jnp.swapaxes(target, 2, 3)
        H, W = W, H

    def dft_mats(n):
        k = np.arange(n)
        ang = 2.0 * np.pi / n * np.outer(k, k)
        return np.cos(ang).astype(np.float32), np.sin(ang).astype(np.float32)

    ch_m, sh_m = dft_mats(H)
    cw_m, sw_m = dft_mats(W)
    # Fused operands: one MXU matmul per DFT stage.
    cwsw = jnp.asarray(np.concatenate([cw_m, sw_m], axis=1))    # (W, 2W)
    chsh = jnp.asarray(np.concatenate([ch_m, sh_m], axis=0))    # (2H, H)

    # Single contiguous block per grid step with all pred planes first, then
    # all target planes: (2, B, 3, H, W) -> free reshape to (6*Bblk*H, W).
    x6 = jnp.stack([pred, target], axis=0)

    # ---- generation-aware VMEM budgeting & batch-block sizing ----
    vmem_cap = _vmem_capacity_bytes()
    vmem_usable = int(vmem_cap * 0.85)         # leave DMA / pipeline headroom

    elem_bytes = H * W * 4
    mats_bytes = (2 * W * W + 2 * H * H) * 4
    per_elem_bytes = 256 * elem_bytes          # dbuf input block + peak intermediates
    bblk_vmem = max(1, (vmem_usable - mats_bytes - (2 << 20)) // per_elem_bytes)
    rows_cap = max(1, 512 // (6 * H))          # fatten tiny stage-1 matmuls
    bblk_cap = int(max(1, min(rows_cap, bblk_vmem, 8, B)))
    bblk = max(d for d in range(1, bblk_cap + 1) if B % d == 0)
    nsteps = B // bblk

    budget = mats_bytes + bblk * per_elem_bytes + (2 << 20)
    vmem_limit = int(min(max(budget, 32 * 1024 * 1024), vmem_usable))
    # Note: very large images (H*W >~ 512*512) need a column-tiled stage 2 to
    # fit v7x's 64 MiB VMEM; not implemented here.

    # Matches the reference: channel loss only scaled when weight > 0.
    weight = high_freq_weight if high_freq_weight > 0 else 1.0
    final_scale = jnp.float32(float(weight) / float(B * H * W) / 1024.0)

    cost = pl.CostEstimate(
        flops=int(B * (24 * H * W * W + 48 * H * H * W)),
        transcendentals=int(B * 6 * H * W),
        bytes_accessed=int(6 * B * H * W * 4 + mats_bytes + nsteps * 8 * 128 * 4),
    )

    grid_spec = pltpu.PrefetchScalarGridSpec(
        num_scalar_prefetch=0,
        grid=(nsteps,),
        in_specs=[
            pl.BlockSpec((2, bblk, 3, H, W), lambda b: (0, b, 0, 0, 0)),
            # Grid-invariant DFT operands: whole-array, single-buffered VMEM.
            pl.BlockSpec(memory_space=pltpu.MemorySpace.VMEM),
            pl.BlockSpec(memory_space=pltpu.MemorySpace.VMEM),
        ],
        out_specs=pl.BlockSpec((1, 8, 128), lambda b: (b, 0, 0)),
    )

    partials = pl.pallas_call(
        _fft_loss_kernel,
        out_shape=jax.ShapeDtypeStruct((nsteps, 8, 128), jnp.float32),
        grid_spec=grid_spec,
        compiler_params=pltpu.CompilerParams(
            dimension_semantics=("parallel",),
            vmem_limit_bytes=vmem_limit),
        cost_estimate=cost,
    )(x6, cwsw, chsh)

    # Each block holds 1024 identical copies of its partial sum; the exact
    # 1/1024 is folded into final_scale, so this is one dense reduce.
    return jnp.sum(partials) * final_scale


def fft_loss_ref(pred, target, high_freq_weight=1.0):
    """Pure-JAX reference matching the PyTorch module semantics."""
    loss = jnp.float32(0.0)
    for i in range(3):
        pm = jnp.abs(jnp.fft.fft2(pred[:, i, :, :]))
        tm = jnp.abs(jnp.fft.fft2(target[:, i, :, :]))
        cl = jnp.mean((pm - tm) ** 2).astype(jnp.float32)
        if high_freq_weight > 0:
            cl = cl * high_freq_weight
        loss = loss + cl
    return loss


if __name__ == "__main__":
    key = jax.random.PRNGKey(0)
    k1, k2 = jax.random.split(key)
    B, C, H, W = 2, 3, 16, 16
    pred = jax.random.normal(k1, (B, C, H, W), jnp.float32)
    target = jax.random.normal(k2, (B, C, H, W), jnp.float32)

    out = fft_loss(pred, target, high_freq_weight=1.0)
    out = jax.block_until_ready(out)

    ref = fft_loss_ref(pred, target, high_freq_weight=1.0)
    np.testing.assert_allclose(np.asarray(out), np.asarray(ref),
                               rtol=1e-2, atol=1e-2)
    print("KERNEL_OK")
</pallas_src>

<mosaic_0001>
module attributes {stable_mosaic.version = 11 : i64} {
  func.func @_fft_loss_kernel(%arg0: i32, %arg1: memref<2x2x3x16x16xf32, #tpu.memory_space<vmem>>, %arg2: memref<16x32xf32, #tpu.memory_space<vmem>>, %arg3: memref<32x16xf32, #tpu.memory_space<vmem>>, %arg4: memref<1x8x128xf32, #tpu.memory_space<vmem>>) attributes {dimension_semantics = [#tpu.dimension_semantics<parallel>], iteration_bounds = array<i64: 1>, scalar_prefetch = 0 : i64, scratch_operands = 0 : i64, tpu.core_type = #tpu.core_type<tc>, window_params = [{transform_indices = @transform_0, window_bounds = array<i64: 2, 2, 3, 16, 16>}, {pipeline_mode = #tpu.pipeline_mode<synchronous>, transform_indices = @transform_1, window_bounds = array<i64: 16, 32>}, {pipeline_mode = #tpu.pipeline_mode<synchronous>, transform_indices = @transform_2, window_bounds = array<i64: 32, 16>}, {transform_indices = @transform_3, window_bounds = array<i64: 1, 8, 128>}]} {
    %c0 = arith.constant 0 : index
    %c0_0 = arith.constant 0 : index
    %0 = vector.load %arg2[%c0, %c0_0] : memref<16x32xf32, #tpu.memory_space<vmem>>, vector<16x32xf32>
    %c0_1 = arith.constant 0 : index
    %c0_2 = arith.constant 0 : index
    %1 = vector.load %arg3[%c0_1, %c0_2] : memref<32x16xf32, #tpu.memory_space<vmem>>, vector<32x16xf32>
    %c0_3 = arith.constant 0 : index
    %c0_4 = arith.constant 0 : index
    %c0_5 = arith.constant 0 : index
    %c0_6 = arith.constant 0 : index
    %c0_7 = arith.constant 0 : index
    %2 = vector.load %arg1[%c0_3, %c0_4, %c0_5, %c0_6, %c0_7] : memref<2x2x3x16x16xf32, #tpu.memory_space<vmem>>, vector<2x2x3x16x16xf32>
    %3 = vector.shape_cast %2 : vector<2x2x3x16x16xf32> to vector<192x16xf32>
    %cst = arith.constant dense<0.000000e+00> : vector<192x32xf32>
    %4 = tpu.matmul %3, %0, %cst {dimension_numbers = #tpu.dot_dimension_numbers<[1], [0], [0], [1], [0, 0, 1, 1], [], []>} : vector<192x16xf32>, vector<16x32xf32>, vector<192x32xf32> -> vector<192x32xf32>
    %5 = vector.extract_strided_slice %4 {offsets = [0, 0], sizes = [16, 16], strides = [1, 1]} : vector<192x32xf32> to vector<16x16xf32>
    %6 = vector.extract_strided_slice %4 {offsets = [16, 0], sizes = [16, 16], strides = [1, 1]} : vector<192x32xf32> to vector<16x16xf32>
    %7 = vector.extract_strided_slice %4 {offsets = [32, 0], sizes = [16, 16], strides = [1, 1]} : vector<192x32xf32> to vector<16x16xf32>
    %8 = vector.extract_strided_slice %4 {offsets = [48, 0], sizes = [16, 16], strides = [1, 1]} : vector<192x32xf32> to vector<16x16xf32>
    %9 = vector.extract_strided_slice %4 {offsets = [64, 0], sizes = [16, 16], strides = [1, 1]} : vector<192x32xf32> to vector<16x16xf32>
    %10 = vector.extract_strided_slice %4 {offsets = [80, 0], sizes = [16, 16], strides = [1, 1]} : vector<192x32xf32> to vector<16x16xf32>
    %11 = vector.extract_strided_slice %4 {offsets = [96, 0], sizes = [16, 16], strides = [1, 1]} : vector<192x32xf32> to vector<16x16xf32>
    %12 = vector.extract_strided_slice %4 {offsets = [112, 0], sizes = [16, 16], strides = [1, 1]} : vector<192x32xf32> to vector<16x16xf32>
    %13 = vector.extract_strided_slice %4 {offsets = [128, 0], sizes = [16, 16], strides = [1, 1]} : vector<192x32xf32> to vector<16x16xf32>
    %14 = vector.extract_strided_slice %4 {offsets = [144, 0], sizes = [16, 16], strides = [1, 1]} : vector<192x32xf32> to vector<16x16xf32>
    %15 = vector.extract_strided_slice %4 {offsets = [160, 0], sizes = [16, 16], strides = [1, 1]} : vector<192x32xf32> to vector<16x16xf32>
    %16 = vector.extract_strided_slice %4 {offsets = [176, 0], sizes = [16, 16], strides = [1, 1]} : vector<192x32xf32> to vector<16x16xf32>
    %17 = vector.extract_strided_slice %4 {offsets = [0, 16], sizes = [16, 16], strides = [1, 1]} : vector<192x32xf32> to vector<16x16xf32>
    %18 = vector.extract_strided_slice %4 {offsets = [16, 16], sizes = [16, 16], strides = [1, 1]} : vector<192x32xf32> to vector<16x16xf32>
    %19 = vector.extract_strided_slice %4 {offsets = [32, 16], sizes = [16, 16], strides = [1, 1]} : vector<192x32xf32> to vector<16x16xf32>
    %20 = vector.extract_strided_slice %4 {offsets = [48, 16], sizes = [16, 16], strides = [1, 1]} : vector<192x32xf32> to vector<16x16xf32>
    %21 = vector.extract_strided_slice %4 {offsets = [64, 16], sizes = [16, 16], strides = [1, 1]} : vector<192x32xf32> to vector<16x16xf32>
    %22 = vector.extract_strided_slice %4 {offsets = [80, 16], sizes = [16, 16], strides = [1, 1]} : vector<192x32xf32> to vector<16x16xf32>
    %23 = vector.extract_strided_slice %4 {offsets = [96, 16], sizes = [16, 16], strides = [1, 1]} : vector<192x32xf32> to vector<16x16xf32>
    %24 = vector.extract_strided_slice %4 {offsets = [112, 16], sizes = [16, 16], strides = [1, 1]} : vector<192x32xf32> to vector<16x16xf32>
    %25 = vector.extract_strided_slice %4 {offsets = [128, 16], sizes = [16, 16], strides = [1, 1]} : vector<192x32xf32> to vector<16x16xf32>
    %26 = vector.extract_strided_slice %4 {offsets = [144, 16], sizes = [16, 16], strides = [1, 1]} : vector<192x32xf32> to vector<16x16xf32>
    %27 = vector.extract_strided_slice %4 {offsets = [160, 16], sizes = [16, 16], strides = [1, 1]} : vector<192x32xf32> to vector<16x16xf32>
    %28 = vector.extract_strided_slice %4 {offsets = [176, 16], sizes = [16, 16], strides = [1, 1]} : vector<192x32xf32> to vector<16x16xf32>
    %29 = tpu.concatenate %5, %6, %7, %8, %9, %10, %11, %12, %13, %14, %15, %16, %17, %18, %19, %20 in 1 : vector<16x16xf32>, vector<16x16xf32>, vector<16x16xf32>, vector<16x16xf32>, vector<16x16xf32>, vector<16x16xf32>, vector<16x16xf32>, vector<16x16xf32>, vector<16x16xf32>, vector<16x16xf32>, vector<16x16xf32>, vector<16x16xf32>, vector<16x16xf32>, vector<16x16xf32>, vector<16x16xf32>, vector<16x16xf32> -> vector<16x256xf32>
    %30 = tpu.concatenate %21, %22, %23, %24, %25, %26, %27, %28 in 1 : vector<16x16xf32>, vector<16x16xf32>, vector<16x16xf32>, vector<16x16xf32>, vector<16x16xf32>, vector<16x16xf32>, vector<16x16xf32>, vector<16x16xf32> -> vector<16x128xf32>
    %31 = tpu.concatenate %29, %30 in 1 : vector<16x256xf32>, vector<16x128xf32> -> vector<16x384xf32>
    %cst_8 = arith.constant dense<0.000000e+00> : vector<32x384xf32>
    %32 = tpu.matmul %1, %31, %cst_8 {dimension_numbers = #tpu.dot_dimension_numbers<[1], [0], [0], [1], [0, 0, 1, 1], [], []>} : vector<32x16xf32>, vector<16x384xf32>, vector<32x384xf32> -> vector<32x384xf32>
    %33 = vector.extract_strided_slice %32 {offsets = [0, 0], sizes = [16, 384], strides = [1, 1]} : vector<32x384xf32> to vector<16x384xf32>
    %34 = vector.extract_strided_slice %32 {offsets = [16, 0], sizes = [16, 384], strides = [1, 1]} : vector<32x384xf32> to vector<16x384xf32>
    %35 = vector.extract_strided_slice %33 {offsets = [0, 0], sizes = [16, 192], strides = [1, 1]} : vector<16x384xf32> to vector<16x192xf32>
    %36 = vector.extract_strided_slice %34 {offsets = [0, 192], sizes = [16, 192], strides = [1, 1]} : vector<16x384xf32> to vector<16x192xf32>
    %37 = arith.subf %35, %36 : vector<16x192xf32>
    %38 = vector.extract_strided_slice %33 {offsets = [0, 192], sizes = [16, 192], strides = [1, 1]} : vector<16x384xf32> to vector<16x192xf32>
    %39 = vector.extract_strided_slice %34 {offsets = [0, 0], sizes = [16, 192], strides = [1, 1]} : vector<16x384xf32> to vector<16x192xf32>
    %40 = arith.addf %38, %39 : vector<16x192xf32>
    %41 = arith.mulf %37, %37 : vector<16x192xf32>
    %42 = arith.mulf %40, %40 : vector<16x192xf32>
    %43 = arith.addf %41, %42 : vector<16x192xf32>
    %44 = math.sqrt %43 : vector<16x192xf32>
    %45 = vector.extract_strided_slice %44 {offsets = [0, 0], sizes = [16, 96], strides = [1, 1]} : vector<16x192xf32> to vector<16x96xf32>
    %46 = vector.extract_strided_slice %44 {offsets = [0, 96], sizes = [16, 96], strides = [1, 1]} : vector<16x192xf32> to vector<16x96xf32>
    %47 = arith.subf %45, %46 : vector<16x96xf32>
    %48 = arith.mulf %47, %47 : vector<16x96xf32>
    %49 = vector.shape_cast %48 : vector<16x96xf32> to vector<1x16x96xf32>
    %cst_9 = arith.constant dense<0.000000e+00> : vector<1xf32>
    %50 = vector.multi_reduction <add>, %49, %cst_9 [1, 2] : vector<1x16x96xf32> to vector<1xf32>
    %51 = vector.shape_cast %50 : vector<1xf32> to vector<1x1x1xf32>
    %52 = vector.extract %51[0, 0, 0] : f32 from vector<1x1x1xf32>
    %53 = vector.broadcast %52 : f32 to vector<1x8x128xf32>
    %c0_10 = arith.constant 0 : index
    %c0_11 = arith.constant 0 : index
    %c0_12 = arith.constant 0 : index
    %54 = vector.load %arg4[%c0_10, %c0_11, %c0_12] : memref<1x8x128xf32, #tpu.memory_space<vmem>>, vector<1x8x128xf32>
    tpu.vector_store %arg4[%c0_10, %c0_11, %c0_12], %53 {strides = array<i32>} : memref<1x8x128xf32, #tpu.memory_space<vmem>>, vector<1x8x128xf32>,
    return
  }
  func.func @transform_0(%arg0: i32) -> (i32, i32, i32, i32, i32) {
    %c0_i32 = arith.constant 0 : i32
    %c0_i32_0 = arith.constant 0 : i32
    %c0_i32_1 = arith.constant 0 : i32
    %c0_i32_2 = arith.constant 0 : i32
    %c0_i32_3 = arith.constant 0 : i32
    return %c0_i32, %arg0, %c0_i32_0, %c0_i32_1, %c0_i32_2 : i32, i32, i32, i32, i32
  }
  func.func @transform_1(%arg0: i32) -> (i32, i32) {
    %c0_i32 = arith.constant 0 : i32
    %c0_i32_0 = arith.constant 0 : i32
    %c0_i32_1 = arith.constant 0 : i32
    return %c0_i32, %c0_i32_0 : i32, i32
  }
  func.func @transform_2(%arg0: i32) -> (i32, i32) {
    %c0_i32 = arith.constant 0 : i32
    %c0_i32_0 = arith.constant 0 : i32
    %c0_i32_1 = arith.constant 0 : i32
    return %c0_i32, %c0_i32_0 : i32, i32
  }
  func.func @transform_3(%arg0: i32) -> (i32, i32, i32) {
    %c0_i32 = arith.constant 0 : i32
    %c0_i32_0 = arith.constant 0 : i32
    %c0_i32_1 = arith.constant 0 : i32
    return %arg0, %c0_i32, %c0_i32_0 : i32, i32, i32
  }
}

</mosaic_0001>

<llo_original>
// kernel: tpu_custom_call.1
$region0: #{tpu_custom_call.1}
  #allocation0 [shape = 'u32[]', space=smem, size = 0x4, offset = 0x4, fixed_abs, tag = 'smem constant byte address 0x4 - core index']
  #allocation1 [shape = 'u32[144,128]{1,0:T(1,128)}', space=vmem, size = 0x12000, scoped, tag = 'internal scratch']
  %s0 = inlined_call_operand.hbm [shape: f32[2,2,3,16,16], index: 0, kind: input, shape index: {}]
  %s1 = inlined_call_operand.vmem [shape: f32[16,32], index: 1, kind: input, shape index: {}]
  %s2 = inlined_call_operand.vmem [shape: f32[32,16], index: 2, kind: input, shape index: {}]
  %s3 = inlined_call_operand.hbm [shape: f32[1,8,128], index: 3, kind: output, shape index: {}]
  %s4 = sld [smem:[#allocation0]]
  $region26: #{tpu_custom_call.1} parent=0
    _
  %s6 = ssub.s32 1, %s4
  %s7 = scalar_select 0, %s6, %s4
  $region1: #{tpu_custom_call.1} parent=0
    #allocation2 [shape = 'u8[98304]{0}', space=vmem, size = 0x18000, scoped, tag = 'input window, operand 0, single buffered']
    #allocation3 [shape = 's32[1]{0}', space=sflag, size = 0x4, scoped, tag = 'scoped memory for tpu_custom_call.1']
    #allocation4 [shape = 's32[1]{0}', space=sflag, size = 0x4, scoped, tag = 'scoped memory for tpu_custom_call.1']
    #allocation5 [shape = 'u8[4096]{0}', space=vmem, size = 0x1000, scoped, tag = 'output window, operand 0, single buffered']
    %8 = vsyncpa [#allocation3], 0
    %9 = vsyncpa [#allocation4], 0
    // Predicated region
    $region2: #{tpu_custom_call.1} parent=1 // pred_check
      _
    $region3: #{tpu_custom_call.1} parent=1 // pred_check_branch
      %11 = sbr.rel (0) target = $region5
    $region4: #{tpu_custom_call.1} parent=1 // pred_region
      %s13 = ssub.s32 3072, 3072
      %14 = vsyncadd [#allocation3], %s13
      %s15 = sshll.u32 [#allocation2], 4
      %s16 = int_to_ptr.vmem [resolvable:$true] %s15
      %21 = dma.hbm_to_vmem [thread:$0]  %s0, 3072, %s16, [#allocation3], 128, 128, 8
    $region5: #{tpu_custom_call.1} parent=1 // pred_fallthru
      _
    // Predicated region
    $region6: #{tpu_custom_call.1} parent=1 // pred_check
      _
    $region7: #{tpu_custom_call.1} parent=1 // pred_check_branch
      %23 = sbr.rel (0) target = $region9
    $region8: #{tpu_custom_call.1} parent=1 // pred_region
      _
    $region9: #{tpu_custom_call.1} parent=1 // pred_fallthru
      _
    // Predicated region
    $region10: #{tpu_custom_call.1} parent=1 // pred_check
      _
    $region11: #{tpu_custom_call.1} parent=1 // pred_check_branch
      %25 = sbr.rel (0) target = $region13
    $region12: #{tpu_custom_call.1} parent=1 // pred_region
      _
    $region13: #{tpu_custom_call.1} parent=1 // pred_fallthru
      _
    // Predicated region
    $region14: #{tpu_custom_call.1} parent=1 // pred_check
      _
    $region15: #{tpu_custom_call.1} parent=1 // pred_check_branch
      %27 = sbr.rel (0) target = $region17
    $region16: #{tpu_custom_call.1} parent=1 // pred_region
      %28 = dma.done [#allocation3], 3072
    $region17: #{tpu_custom_call.1} parent=1 // pred_fallthru
      _
    %v29 = vld [vmem:[%s1] sm:$0xff]
    %v30 = vld [vmem:[%s1 + $0x8] sm:$0xff]
    %v31 = vld [vmem:[%s2] sm:$0xff]
    %v32 = vld [vmem:[%s2 + $0x8] sm:$0xff]
    %v33 = vld [vmem:[%s2 + $0x10] sm:$0xff]
    %v34 = vld [vmem:[%s2 + $0x18] sm:$0xff]
    %v35 = vld [vmem:[#allocation2] sm:$0xff]
    %v36 = vld [vmem:[#allocation2 + $0x8] sm:$0xff]
    %v37 = vld [vmem:[#allocation2 + $0x10] sm:$0xff]
    %v38 = vld [vmem:[#allocation2 + $0x18] sm:$0xff]
    %v39 = vld [vmem:[#allocation2 + $0x20] sm:$0xff]
    %v40 = vld [vmem:[#allocation2 + $0x28] sm:$0xff]
    %v41 = vld [vmem:[#allocation2 + $0x30] sm:$0xff]
    %v42 = vld [vmem:[#allocation2 + $0x38] sm:$0xff]
    %v43 = vld [vmem:[#allocation2 + $0x40] sm:$0xff]
    %v44 = vld [vmem:[#allocation2 + $0x48] sm:$0xff]
    %v45 = vld [vmem:[#allocation2 + $0x50] sm:$0xff]
    %v46 = vld [vmem:[#allocation2 + $0x58] sm:$0xff]
    %v47 = vld [vmem:[#allocation2 + $0x60] sm:$0xff]
    %v48 = vld [vmem:[#allocation2 + $0x68] sm:$0xff]
    %v49 = vld [vmem:[#allocation2 + $0x70] sm:$0xff]
    %v50 = vld [vmem:[#allocation2 + $0x78] sm:$0xff]
    %v51 = vld [vmem:[#allocation2 + $0x80] sm:$0xff]
    %v52 = vld [vmem:[#allocation2 + $0x88] sm:$0xff]
    %v53 = vld [vmem:[#allocation2 + $0x90] sm:$0xff]
    %v54 = vld [vmem:[#allocation2 + $0x98] sm:$0xff]
    %v55 = vld [vmem:[#allocation2 + $0xa0] sm:$0xff]
    %v56 = vld [vmem:[#allocation2 + $0xa8] sm:$0xff]
    %v57 = vld [vmem:[#allocation2 + $0xb0] sm:$0xff]
    %v58 = vld [vmem:[#allocation2 + $0xb8] sm:$0xff]
    %vm59 = vcmask 130048
    %v61 = vsel %vm59, %v35, 0
    %v64 = vsel %vm59, %v36, 0
    %v67 = vsel %vm59, %v37, 0
    %v70 = vsel %vm59, %v38, 0
    %v73 = vsel %vm59, %v39, 0
    %v76 = vsel %vm59, %v40, 0
    %v79 = vsel %vm59, %v41, 0
    %v82 = vsel %vm59, %v42, 0
    %v85 = vsel %vm59, %v43, 0
    %v88 = vsel %vm59, %v44, 0
    %v91 = vsel %vm59, %v45, 0
    %v94 = vsel %vm59, %v46, 0
    %v97 = vsel %vm59, %v47, 0
    %v100 = vsel %vm59, %v48, 0
    %v103 = vsel %vm59, %v49, 0
    %v106 = vsel %vm59, %v50, 0
    %v109 = vsel %vm59, %v51, 0
    %v112 = vsel %vm59, %v52, 0
    %v115 = vsel %vm59, %v53, 0
    %v118 = vsel %vm59, %v54, 0
    %v121 = vsel %vm59, %v55, 0
    %v124 = vsel %vm59, %v56, 0
    %v127 = vsel %vm59, %v57, 0
    %v130 = vsel %vm59, %v58, 0
    %132 = vmatprep.subr.mxu0 0.0
    %133 = vmatpush1.msra.mxu0 %v29
    %134 = vmatprep.subr.mxu0 0.0
    %135 = vmatpush1.msra.mxu0 %v30
    %136 = vmatprep.subr.mxu0 0.0
    %137 = vmatpush1.msra.mxu0 0.0
    %138 = vmatprep.subr.mxu0 0.0
    %139 = vmatpush1.msra.mxu0 0.0
    %140 = vmatprep.subr.mxu0 0.0
    %141 = vmatpush1.msra.mxu0 0.0
    %142 = vmatprep.subr.mxu0 0.0
    %143 = vmatpush1.msra.mxu0 0.0
    %144 = vmatprep.subr.mxu0 0.0
    %145 = vmatpush1.msra.mxu0 0.0
    %146 = vmatprep.subr.mxu0 0.0
    %147 = vmatpush1.msra.mxu0 0.0
    %148 = vmatprep.subr.mxu0 0.0
    %149 = vmatpush1.msra.mxu0 0.0
    %150 = vmatprep.subr.mxu0 0.0
    %151 = vmatpush1.msra.mxu0 0.0
    %152 = vmatprep.subr.mxu0 0.0
    %153 = vmatpush1.msra.mxu0 0.0
    %154 = vmatprep.subr.mxu0 0.0
    %155 = vmatpush1.msra.mxu0 0.0
    %156 = vmatprep.subr.mxu0 0.0
    %157 = vmatpush1.msra.mxu0 0.0
    %158 = vmatprep.subr.mxu0 0.0
    %159 = vmatpush1.msra.mxu0 0.0
    %160 = vmatprep.subr.mxu0 0.0
    %161 = vmatpush1.msra.mxu0 0.0
    %162 = vmatprep.subr.mxu0 0.0
    %163 = vmatpush1.msra.mxu0 0.0
    %164 = vmatprep.subr.mxu0 0.0
    %165 = vmatpush1.msra.mxu0 0.0
    %166 = vmatprep.subr.mxu0 0.0
    %167 = vmatpush1.msra.mxu0 0.0
    %168 = vmatprep.subr.mxu0 0.0
    %169 = vmatpush1.msra.mxu0 0.0
    %170 = vmatprep.subr.mxu0 0.0
    %171 = vmatpush1.msra.mxu0 0.0
    %172 = vmatprep.subr.mxu0 0.0
    %173 = vmatpush1.msra.mxu0 0.0
    %174 = vmatprep.subr.mxu0 0.0
    %175 = vmatpush1.msra.mxu0 0.0
    %176 = vmatprep.subr.mxu0 0.0
    %177 = vmatpush1.msra.mxu0 0.0
    %178 = vmatprep.subr.mxu0 0.0
    %179 = vmatpush1.msra.mxu0 0.0
    %180 = vmatprep.subr.mxu0 0.0
    %181 = vmatpush1.msra.mxu0 0.0
    %182 = vmatprep.subr.mxu0 0.0
    %183 = vmatpush1.msra.mxu0 0.0
    %184 = vmatprep.subr.mxu0 0.0
    %185 = vmatpush1.msra.mxu0 0.0
    %186 = vmatprep.subr.mxu0 0.0
    %187 = vmatpush1.msra.mxu0 0.0
    %188 = vmatprep.subr.mxu0 0.0
    %189 = vmatpush1.msra.mxu0 0.0
    %190 = vmatprep.subr.mxu0 0.0
    %191 = vmatpush1.msra.mxu0 0.0
    %192 = vmatprep.subr.mxu0 0.0
    %193 = vmatpush1.msra.mxu0 0.0
    %194 = vmatprep.subr.mxu0 0.0
    %195 = vmatpush1.msra.mxu0 0.0
    %196 = vmatprep.mubr.f32.mxu0 0.0
    %197 = vmatmul.mubr.f32.gmra.mrb[0].mxu0 %v61
    %v198 = vpop.f32.mrb[0].mxu0
    %v199 = vadd.f32 0.0, %v198
    %v200 = vpop.f32.mrb[0].mxu0
    %201 = vmatprep.mubr.f32.mxu0 0.0
    %202 = vmatmul.mubr.f32.gmra.mrb[0].mxu0 %v64
    %v203 = vpop.f32.mrb[0].mxu0
    %v204 = vadd.f32 0.0, %v203
    %v205 = vpop.f32.mrb[0].mxu0
    %206 = vmatprep.mubr.f32.mxu0 0.0
    %207 = vmatmul.mubr.f32.gmra.mrb[0].mxu0 %v67
    %v208 = vpop.f32.mrb[0].mxu0
    %v209 = vadd.f32 0.0, %v208
    %v210 = vpop.f32.mrb[0].mxu0
    %211 = vmatprep.mubr.f32.mxu0 0.0
    %212 = vmatmul.mubr.f32.gmra.mrb[0].mxu0 %v70
    %v213 = vpop.f32.mrb[0].mxu0
    %v214 = vadd.f32 0.0, %v213
    %v215 = vpop.f32.mrb[0].mxu0
    %216 = vmatprep.mubr.f32.mxu0 0.0
    %217 = vmatmul.mubr.f32.gmra.mrb[0].mxu0 %v73
    %v218 = vpop.f32.mrb[0].mxu0
    %v219 = vadd.f32 0.0, %v218
    %v220 = vpop.f32.mrb[0].mxu0
    %221 = vmatprep.mubr.f32.mxu0 0.0
    %222 = vmatmul.mubr.f32.gmra.mrb[0].mxu0 %v76
    %v223 = vpop.f32.mrb[0].mxu0
    %v224 = vadd.f32 0.0, %v223
    %v225 = vpop.f32.mrb[0].mxu0
    %226 = vmatprep.mubr.f32.mxu0 0.0
    %227 = vmatmul.mubr.f32.gmra.mrb[0].mxu0 %v79
    %v228 = vpop.f32.mrb[0].mxu0
    %v229 = vadd.f32 0.0, %v228
    %v230 = vpop.f32.mrb[0].mxu0
    %231 = vmatprep.mubr.f32.mxu0 0.0
    %232 = vmatmul.mubr.f32.gmra.mrb[0].mxu0 %v82
    %v233 = vpop.f32.mrb[0].mxu0
    %v234 = vadd.f32 0.0, %v233
    %v235 = vpop.f32.mrb[0].mxu0
    %236 = vmatprep.mubr.f32.mxu0 0.0
    %237 = vmatmul.mubr.f32.gmra.mrb[0].mxu0 %v85
    %v238 = vpop.f32.mrb[0].mxu0
    %v239 = vadd.f32 0.0, %v238
    %v240 = vpop.f32.mrb[0].mxu0
    %241 = vmatprep.mubr.f32.mxu0 0.0
    %242 = vmatmul.mubr.f32.gmra.mrb[0].mxu0 %v88
    %v243 = vpop.f32.mrb[0].mxu0
    %v244 = vadd.f32 0.0, %v243
    %v245 = vpop.f32.mrb[0].mxu0
    %246 = vmatprep.mubr.f32.mxu0 0.0
    %247 = vmatmul.mubr.f32.gmra.mrb[0].mxu0 %v91
    %v248 = vpop.f32.mrb[0].mxu0
    %v249 = vadd.f32 0.0, %v248
    %v250 = vpop.f32.mrb[0].mxu0
    %251 = vmatprep.mubr.f32.mxu0 0.0
    %252 = vmatmul.mubr.f32.gmra.mrb[0].mxu0 %v94
    %v253 = vpop.f32.mrb[0].mxu0
    %v254 = vadd.f32 0.0, %v253
    %v255 = vpop.f32.mrb[0].mxu0
    %256 = vmatprep.mubr.f32.mxu0 0.0
    %257 = vmatmul.mubr.f32.gmra.mrb[0].mxu0 %v97
    %v258 = vpop.f32.mrb[0].mxu0
    %v259 = vadd.f32 0.0, %v258
    %v260 = vpop.f32.mrb[0].mxu0
    %261 = vmatprep.mubr.f32.mxu0 0.0
    %262 = vmatmul.mubr.f32.gmra.mrb[0].mxu0 %v100
    %v263 = vpop.f32.mrb[0].mxu0
    %v264 = vadd.f32 0.0, %v263
    %v265 = vpop.f32.mrb[0].mxu0
    %266 = vmatprep.mubr.f32.mxu0 0.0
    %267 = vmatmul.mubr.f32.gmra.mrb[0].mxu0 %v103
    %v268 = vpop.f32.mrb[0].mxu0
    %v269 = vadd.f32 0.0, %v268
    %v270 = vpop.f32.mrb[0].mxu0
    %271 = vmatprep.mubr.f32.mxu0 0.0
    %272 = vmatmul.mubr.f32.gmra.mrb[0].mxu0 %v106
    %v273 = vpop.f32.mrb[0].mxu0
    %v274 = vadd.f32 0.0, %v273
    %v275 = vpop.f32.mrb[0].mxu0
    %276 = vmatprep.mubr.f32.mxu0 0.0
    %277 = vmatmul.mubr.f32.gmra.mrb[0].mxu0 %v109
    %v278 = vpop.f32.mrb[0].mxu0
    %v279 = vadd.f32 0.0, %v278
    %v280 = vpop.f32.mrb[0].mxu0
    %281 = vmatprep.mubr.f32.mxu0 0.0
    %282 = vmatmul.mubr.f32.gmra.mrb[0].mxu0 %v112
    %v283 = vpop.f32.mrb[0].mxu0
    %v284 = vadd.f32 0.0, %v283
    %v285 = vpop.f32.mrb[0].mxu0
    %286 = vmatprep.mubr.f32.mxu0 0.0
    %287 = vmatmul.mubr.f32.gmra.mrb[0].mxu0 %v115
    %v288 = vpop.f32.mrb[0].mxu0
    %v289 = vadd.f32 0.0, %v288
    %v290 = vpop.f32.mrb[0].mxu0
    %291 = vmatprep.mubr.f32.mxu0 0.0
    %292 = vmatmul.mubr.f32.gmra.mrb[0].mxu0 %v118
    %v293 = vpop.f32.mrb[0].mxu0
    %v294 = vadd.f32 0.0, %v293
    %v295 = vpop.f32.mrb[0].mxu0
    %296 = vmatprep.mubr.f32.mxu0 0.0
    %297 = vmatmul.mubr.f32.gmra.mrb[0].mxu0 %v121
    %v298 = vpop.f32.mrb[0].mxu0
    %v299 = vadd.f32 0.0, %v298
    %v300 = vpop.f32.mrb[0].mxu0
    %301 = vmatprep.mubr.f32.mxu0 0.0
    %302 = vmatmul.mubr.f32.gmra.mrb[0].mxu0 %v124
    %v303 = vpop.f32.mrb[0].mxu0
    %v304 = vadd.f32 0.0, %v303
    %v305 = vpop.f32.mrb[0].mxu0
    %306 = vmatprep.mubr.f32.mxu0 0.0
    %307 = vmatmul.mubr.f32.gmra.mrb[0].mxu0 %v127
    %v308 = vpop.f32.mrb[0].mxu0
    %v309 = vadd.f32 0.0, %v308
    %v310 = vpop.f32.mrb[0].mxu0
    %311 = vmatprep.mubr.f32.mxu0 0.0
    %312 = vmatmul.mubr.f32.gmra.mrb[0].mxu0 %v130
    %v313 = vpop.f32.mrb[0].mxu0
    %v314 = vadd.f32 0.0, %v313
    %v315 = vpop.f32.mrb[0].mxu0
    %316 = vdwg.mxu0
    %319 = vrot.lane.b32.xlu0 %v209, 16
    %v320 = vpop.permute.xlu0 %319
    %321 = vrot.lane.b32.xlu0 %v214, 16
    %v322 = vpop.permute.xlu0 %321
    %327 = vrot.lane.b32.xlu0 %v219, 32
    %v328 = vpop.permute.xlu0 %327
    %329 = vrot.lane.b32.xlu0 %v224, 32
    %v330 = vpop.permute.xlu0 %329
    %335 = vrot.lane.b32.xlu0 %v229, 48
    %v336 = vpop.permute.xlu0 %335
    %337 = vrot.lane.b32.xlu0 %v234, 48
    %v338 = vpop.permute.xlu0 %337
    %343 = vrot.lane.b32.xlu0 %v239, 64
    %v344 = vpop.permute.xlu0 %343
    %345 = vrot.lane.b32.xlu0 %v244, 64
    %v346 = vpop.permute.xlu0 %345
    %351 = vrot.lane.b32.xlu0 %v249, 80
    %v352 = vpop.permute.xlu0 %351
    %353 = vrot.lane.b32.xlu0 %v254, 80
    %v354 = vpop.permute.xlu0 %353
    %359 = vrot.lane.b32.xlu0 %v259, 96
    %v360 = vpop.permute.xlu0 %359
    %361 = vrot.lane.b32.xlu0 %v264, 96
    %v362 = vpop.permute.xlu0 %361
    %367 = vrot.lane.b32.xlu0 %v269, 112
    %v368 = vpop.permute.xlu0 %367
    %369 = vrot.lane.b32.xlu0 %v274, 112
    %v370 = vpop.permute.xlu0 %369
    %375 = vrot.lane.b32.xlu0 %v289, 16
    %v376 = vpop.permute.xlu0 %375
    %377 = vrot.lane.b32.xlu0 %v294, 16
    %v378 = vpop.permute.xlu0 %377
    %383 = vrot.lane.b32.xlu0 %v299, 32
    %v384 = vpop.permute.xlu0 %383
    %385 = vrot.lane.b32.xlu0 %v304, 32
    %v386 = vpop.permute.xlu0 %385
    %391 = vrot.lane.b32.xlu0 %v309, 48
    %v392 = vpop.permute.xlu0 %391
    %393 = vrot.lane.b32.xlu0 %v314, 48
    %v394 = vpop.permute.xlu0 %393
    %399 = vrot.lane.b32.xlu0 %v199, 48
    %v400 = vpop.permute.xlu0 %399
    %401 = vrot.lane.b32.xlu0 %v204, 48
    %v402 = vpop.permute.xlu0 %401
    %405 = vrot.lane.b32.xlu0 %v209, 64
    %v406 = vpop.permute.xlu0 %405
    %407 = vrot.lane.b32.xlu0 %v214, 64
    %v408 = vpop.permute.xlu0 %407
    %411 = vrot.lane.b32.xlu0 %v219, 80
    %v412 = vpop.permute.xlu0 %411
    %413 = vrot.lane.b32.xlu0 %v224, 80
    %v414 = vpop.permute.xlu0 %413
    %417 = vrot.lane.b32.xlu0 %v229, 96
    %v418 = vpop.permute.xlu0 %417
    %419 = vrot.lane.b32.xlu0 %v234, 96
    %v420 = vpop.permute.xlu0 %419
    %v423 = vsel %vm59, %v199, %v320
    %v424 = vsel %vm59, %v204, %v322
    %vm425 = vcmask 261120
    %v426 = vsel %vm425, %v423, %v328
    %v427 = vsel %vm425, %v424, %v330
    %vm428 = vcmask 392192
    %v429 = vsel %vm428, %v426, %v336
    %v430 = vsel %vm428, %v427, %v338
    %vm431 = vcmask 523264
    %v432 = vsel %vm431, %v429, %v344
    %v433 = vsel %vm431, %v430, %v346
    %vm434 = vcmask 654336
    %v435 = vsel %vm434, %v432, %v352
    %v436 = vsel %vm434, %v433, %v354
    %vm437 = vcmask 785408
    %v438 = vsel %vm437, %v435, %v360
    %v439 = vsel %vm437, %v436, %v362
    %vm440 = vcmask 916480
    %v441 = vsel %vm440, %v438, %v368
    %v442 = vsel %vm440, %v439, %v370
    %v443 = vsel %vm59, %v279, %v376
    %v444 = vsel %vm59, %v284, %v378
    %v445 = vsel %vm425, %v443, %v384
    %v446 = vsel %vm425, %v444, %v386
    %v447 = vsel %vm428, %v445, %v392
    %v448 = vsel %vm428, %v446, %v394
    %v449 = vsel %vm431, %v447, %v400
    %v450 = vsel %vm431, %v448, %v402
    %v451 = vsel %vm434, %v449, %v406
    %v452 = vsel %vm434, %v450, %v408
    %v453 = vsel %vm437, %v451, %v412
    %v454 = vsel %vm437, %v452, %v414
    %v455 = vsel %vm440, %v453, %v418
    %v456 = vsel %vm440, %v454, %v420
    %457 = vrot.lane.b32.xlu0 %v239, 112
    %v458 = vpop.permute.xlu0 %457
    %459 = vrot.lane.b32.xlu0 %v244, 112
    %v460 = vpop.permute.xlu0 %459
    %463 = vrot.lane.b32.xlu0 %v259, 16
    %v464 = vpop.permute.xlu0 %463
    %465 = vrot.lane.b32.xlu0 %v264, 16
    %v466 = vpop.permute.xlu0 %465
    %469 = vrot.lane.b32.xlu0 %v269, 32
    %v470 = vpop.permute.xlu0 %469
    %471 = vrot.lane.b32.xlu0 %v274, 32
    %v472 = vpop.permute.xlu0 %471
    %477 = vrot.lane.b32.xlu0 %v279, 48
    %v478 = vpop.permute.xlu0 %477
    %479 = vrot.lane.b32.xlu0 %v284, 48
    %v480 = vpop.permute.xlu0 %479
    %483 = vrot.lane.b32.xlu0 %v289, 64
    %v484 = vpop.permute.xlu0 %483
    %485 = vrot.lane.b32.xlu0 %v294, 64
    %v486 = vpop.permute.xlu0 %485
    %489 = vrot.lane.b32.xlu0 %v299, 80
    %v490 = vpop.permute.xlu0 %489
    %491 = vrot.lane.b32.xlu0 %v304, 80
    %v492 = vpop.permute.xlu0 %491
    %495 = vrot.lane.b32.xlu0 %v309, 96
    %v496 = vpop.permute.xlu0 %495
    %497 = vrot.lane.b32.xlu0 %v314, 96
    %v498 = vpop.permute.xlu0 %497
    %v501 = vsel %vm59, %v458, %v249
    %v502 = vsel %vm59, %v460, %v254
    %v503 = vsel %vm425, %v501, %v464
    %v504 = vsel %vm425, %v502, %v466
    %v505 = vsel %vm428, %v503, %v470
    %v506 = vsel %vm428, %v504, %v472
    %v507 = vsel %vm431, %v505, %v478
    %v508 = vsel %vm431, %v506, %v480
    %v509 = vsel %vm434, %v507, %v484
    %v510 = vsel %vm434, %v508, %v486
    %v511 = vsel %vm437, %v509, %v490
    %v512 = vsel %vm437, %v510, %v492
    %v513 = vsel %vm440, %v511, %v496
    %v514 = vsel %vm440, %v512, %v498
    %v516 = vsel %vm59, %v31, 0
    %v519 = vsel %vm59, %v32, 0
    %v522 = vsel %vm59, %v33, 0
    %v525 = vsel %vm59, %v34, 0
    %527 = vmatprep.subr.mxu0 %v455
    %528 = vmatpush1.msra.mxu0 %v441
    %529 = vmatprep.subr.mxu0 %v456
    %530 = vmatpush1.msra.mxu0 %v442
    %531 = vmatprep.subr.mxu0 0.0
    %532 = vmatpush1.msra.mxu0 0.0
    %533 = vmatprep.subr.mxu0 0.0
    %534 = vmatpush1.msra.mxu0 0.0
    %535 = vmatprep.subr.mxu0 0.0
    %536 = vmatpush1.msra.mxu0 0.0
    %537 = vmatprep.subr.mxu0 0.0
    %538 = vmatpush1.msra.mxu0 0.0
    %539 = vmatprep.subr.mxu0 0.0
    %540 = vmatpush1.msra.mxu0 0.0
    %541 = vmatprep.subr.mxu0 0.0
    %542 = vmatpush1.msra.mxu0 0.0
    %543 = vmatprep.subr.mxu0 0.0
    %544 = vmatpush1.msra.mxu0 0.0
    %545 = vmatprep.subr.mxu0 0.0
    %546 = vmatpush1.msra.mxu0 0.0
    %547 = vmatprep.subr.mxu0 0.0
    %548 = vmatpush1.msra.mxu0 0.0
    %549 = vmatprep.subr.mxu0 0.0
    %550 = vmatpush1.msra.mxu0 0.0
    %551 = vmatprep.subr.mxu0 0.0
    %552 = vmatpush1.msra.mxu0 0.0
    %553 = vmatprep.subr.mxu0 0.0
    %554 = vmatpush1.msra.mxu0 0.0
    %555 = vmatprep.subr.mxu0 0.0
    %556 = vmatpush1.msra.mxu0 0.0
    %557 = vmatprep.subr.mxu0 0.0
    %558 = vmatpush1.msra.mxu0 0.0
    %559 = vmatprep.subr.mxu0 0.0
    %560 = vmatpush1.msra.mxu0 0.0
    %561 = vmatprep.subr.mxu0 0.0
    %562 = vmatpush1.msra.mxu0 0.0
    %563 = vmatprep.subr.mxu0 0.0
    %564 = vmatpush1.msra.mxu0 0.0
    %565 = vmatprep.subr.mxu0 0.0
    %566 = vmatpush1.msra.mxu0 0.0
    %567 = vmatprep.subr.mxu0 0.0
    %568 = vmatpush1.msra.mxu0 0.0
    %569 = vmatprep.subr.mxu0 0.0
    %570 = vmatpush1.msra.mxu0 0.0
    %571 = vmatprep.subr.mxu0 0.0
    %572 = vmatpush1.msra.mxu0 0.0
    %573 = vmatprep.subr.mxu0 0.0
    %574 = vmatpush1.msra.mxu0 0.0
    %575 = vmatprep.subr.mxu0 0.0
    %576 = vmatpush1.msra.mxu0 0.0
    %577 = vmatprep.subr.mxu0 0.0
    %578 = vmatpush1.msra.mxu0 0.0
    %579 = vmatprep.subr.mxu0 0.0
    %580 = vmatpush1.msra.mxu0 0.0
    %581 = vmatprep.subr.mxu0 0.0
    %582 = vmatpush1.msra.mxu0 0.0
    %583 = vmatprep.subr.mxu0 0.0
    %584 = vmatpush1.msra.mxu0 0.0
    %585 = vmatprep.subr.mxu0 0.0
    %586 = vmatpush1.msra.mxu0 0.0
    %587 = vmatprep.subr.mxu0 0.0
    %588 = vmatpush1.msra.mxu0 0.0
    %589 = vmatprep.subr.mxu0 0.0
    %590 = vmatpush1.msra.mxu0 0.0
    %591 = vmatprep.mubr.f32.mxu0 0.0
    %592 = vmatmul.mubr.f32.gmra.mrb[0].mxu0 %v516
    %v593 = vpop.f32.mrb[0].mxu0
    %v594 = vadd.f32 0.0, %v593
    %v595 = vpop.f32.mrb[0].mxu0
    %v596 = vadd.f32 0.0, %v595
    %597 = vmatprep.mubr.f32.mxu0 0.0
    %598 = vmatmul.mubr.f32.gmra.mrb[0].mxu0 %v519
    %v599 = vpop.f32.mrb[0].mxu0
    %v600 = vadd.f32 0.0, %v599
    %v601 = vpop.f32.mrb[0].mxu0
    %v602 = vadd.f32 0.0, %v601
    %603 = vmatprep.mubr.f32.mxu0 0.0
    %604 = vmatmul.mubr.f32.gmra.mrb[0].mxu0 %v522
    %v605 = vpop.f32.mrb[0].mxu0
    %v606 = vadd.f32 0.0, %v605
    %v607 = vpop.f32.mrb[0].mxu0
    %v608 = vadd.f32 0.0, %v607
    %609 = vmatprep.mubr.f32.mxu0 0.0
    %610 = vmatmul.mubr.f32.gmra.mrb[0].mxu0 %v525
    %v611 = vpop.f32.mrb[0].mxu0
    %v612 = vadd.f32 0.0, %v611
    %v613 = vpop.f32.mrb[0].mxu0
    %v614 = vadd.f32 0.0, %v613
    %615 = vdwg.mxu0
    %616 = vmatprep.subr.mxu0 0.0
    %617 = vmatpush1.msra.mxu0 %v513
    %618 = vmatprep.subr.mxu0 0.0
    %619 = vmatpush1.msra.mxu0 %v514
    %620 = vmatprep.subr.mxu0 0.0
    %621 = vmatpush1.msra.mxu0 0.0
    %622 = vmatprep.subr.mxu0 0.0
    %623 = vmatpush1.msra.mxu0 0.0
    %624 = vmatprep.subr.mxu0 0.0
    %625 = vmatpush1.msra.mxu0 0.0
    %626 = vmatprep.subr.mxu0 0.0
    %627 = vmatpush1.msra.mxu0 0.0
    %628 = vmatprep.subr.mxu0 0.0
    %629 = vmatpush1.msra.mxu0 0.0
    %630 = vmatprep.subr.mxu0 0.0
    %631 = vmatpush1.msra.mxu0 0.0
    %632 = vmatprep.subr.mxu0 0.0
    %633 = vmatpush1.msra.mxu0 0.0
    %634 = vmatprep.subr.mxu0 0.0
    %635 = vmatpush1.msra.mxu0 0.0
    %636 = vmatprep.subr.mxu0 0.0
    %637 = vmatpush1.msra.mxu0 0.0
    %638 = vmatprep.subr.mxu0 0.0
    %639 = vmatpush1.msra.mxu0 0.0
    %640 = vmatprep.subr.mxu0 0.0
    %641 = vmatpush1.msra.mxu0 0.0
    %642 = vmatprep.subr.mxu0 0.0
    %643 = vmatpush1.msra.mxu0 0.0
    %644 = vmatprep.subr.mxu0 0.0
    %645 = vmatpush1.msra.mxu0 0.0
    %646 = vmatprep.subr.mxu0 0.0
    %647 = vmatpush1.msra.mxu0 0.0
    %648 = vmatprep.subr.mxu0 0.0
    %649 = vmatpush1.msra.mxu0 0.0
    %650 = vmatprep.subr.mxu0 0.0
    %651 = vmatpush1.msra.mxu0 0.0
    %652 = vmatprep.subr.mxu0 0.0
    %653 = vmatpush1.msra.mxu0 0.0
    %654 = vmatprep.subr.mxu0 0.0
    %655 = vmatpush1.msra.mxu0 0.0
    %656 = vmatprep.subr.mxu0 0.0
    %657 = vmatpush1.msra.mxu0 0.0
    %658 = vmatprep.subr.mxu0 0.0
    %659 = vmatpush1.msra.mxu0 0.0
    %660 = vmatprep.subr.mxu0 0.0
    %661 = vmatpush1.msra.mxu0 0.0
    %662 = vmatprep.subr.mxu0 0.0
    %663 = vmatpush1.msra.mxu0 0.0
    %664 = vmatprep.subr.mxu0 0.0
    %665 = vmatpush1.msra.mxu0 0.0
    %666 = vmatprep.subr.mxu0 0.0
    %667 = vmatpush1.msra.mxu0 0.0
    %668 = vmatprep.subr.mxu0 0.0
    %669 = vmatpush1.msra.mxu0 0.0
    %670 = vmatprep.subr.mxu0 0.0
    %671 = vmatpush1.msra.mxu0 0.0
    %672 = vmatprep.subr.mxu0 0.0
    %673 = vmatpush1.msra.mxu0 0.0
    %674 = vmatprep.subr.mxu0 0.0
    %675 = vmatpush1.msra.mxu0 0.0
    %676 = vmatprep.subr.mxu0 0.0
    %677 = vmatpush1.msra.mxu0 0.0
    %678 = vmatprep.subr.mxu0 0.0
    %679 = vmatpush1.msra.mxu0 0.0
    %680 = vmatprep.mubr.f32.mxu0 0.0
    %681 = vmatmul.mubr.f32.gmra.mrb[0].mxu0 %v516
    %v682 = vpop.f32.mrb[0].mxu0
    %v683 = vadd.f32 0.0, %v682
    %v684 = vpop.f32.mrb[0].mxu0
    %685 = vmatprep.mubr.f32.mxu0 0.0
    %686 = vmatmul.mubr.f32.gmra.mrb[0].mxu0 %v519
    %v687 = vpop.f32.mrb[0].mxu0
    %v688 = vadd.f32 0.0, %v687
    %v689 = vpop.f32.mrb[0].mxu0
    %690 = vmatprep.mubr.f32.mxu0 0.0
    %691 = vmatmul.mubr.f32.gmra.mrb[0].mxu0 %v522
    %v692 = vpop.f32.mrb[0].mxu0
    %v693 = vadd.f32 0.0, %v692
    %v694 = vpop.f32.mrb[0].mxu0
    %695 = vmatprep.mubr.f32.mxu0 0.0
    %696 = vmatmul.mubr.f32.gmra.mrb[0].mxu0 %v525
    %v697 = vpop.f32.mrb[0].mxu0
    %v698 = vadd.f32 0.0, %v697
    %v699 = vpop.f32.mrb[0].mxu0
    %700 = vdwg.mxu0
    %705 = vrot.lane.b32.xlu0 %v608, 64
    %v706 = vpop.permute.xlu0 %705
    %707 = vrot.lane.b32.xlu0 %v693, 64
    %v708 = vpop.permute.xlu0 %707
    %709 = vrot.lane.b32.xlu0 %v614, 64
    %v710 = vpop.permute.xlu0 %709
    %711 = vrot.lane.b32.xlu0 %v698, 64
    %v712 = vpop.permute.xlu0 %711
    %v713 = vsel %vm431, %v706, %v708
    %v714 = vsel %vm431, %v710, %v712
    %v719 = vsub.f32 %v594, %v713
    %v720 = vsub.f32 %v596, %v708
    %v721 = vsub.f32 %v600, %v714
    %v722 = vsub.f32 %v602, %v712
    %725 = vrot.lane.b32.xlu0 %v606, 64
    %v726 = vpop.permute.xlu0 %725
    %727 = vrot.lane.b32.xlu0 %v612, 64
    %v728 = vpop.permute.xlu0 %727
    %v729 = vsel %vm431, %v726, %v706
    %v730 = vsel %vm431, %v728, %v710
    %v735 = vadd.f32 %v596, %v726
    %v736 = vadd.f32 %v683, %v729
    %v737 = vadd.f32 %v602, %v728
    %v738 = vadd.f32 %v688, %v730
    %v739 = vmul.f32 %v719, %v719
    %v740 = vmul.f32 %v720, %v720
    %v741 = vmul.f32 %v721, %v721
    %v742 = vmul.f32 %v722, %v722
    %v743 = vmul.f32 %v735, %v735
    %v744 = vmul.f32 %v736, %v736
    %v745 = vmul.f32 %v737, %v737
    %v746 = vmul.f32 %v738, %v738
    %751 = vrot.lane.b32.xlu0 %v743, 64
    %v752 = vpop.permute.xlu0 %751
    %753 = vrot.lane.b32.xlu0 %v744, 64
    %v754 = vpop.permute.xlu0 %753
    %755 = vrot.lane.b32.xlu0 %v745, 64
    %v756 = vpop.permute.xlu0 %755
    %757 = vrot.lane.b32.xlu0 %v746, 64
    %v758 = vpop.permute.xlu0 %757
    %v759 = vsel %vm431, %v752, %v754
    %v760 = vsel %vm431, %v756, %v758
    %v765 = vadd.f32 %v739, %v759
    %v766 = vadd.f32 %v740, %v754
    %v767 = vadd.f32 %v741, %v760
    %v768 = vadd.f32 %v742, %v758
    %v769 = vrsqrt.pop %v765
    %v770 = vmul.f32 %v765, %v769
    %vm771 = vcmp.eq.f32.partialorder %v765, inf
    %v772 = vsel %vm771, %v765, %v770
    %vm773 = vcmp.eq.f32.partialorder %v765, 0.0
    %v774 = vand.u32 %v765, 2147483648
    %v775 = vsel %vm773, %v774, %v772
    %v776 = vrsqrt.pop %v766
    %v777 = vmul.f32 %v766, %v776
    %vm778 = vcmp.eq.f32.partialorder %v766, inf
    %v779 = vsel %vm778, %v766, %v777
    %vm780 = vcmp.eq.f32.partialorder %v766, 0.0
    %v781 = vand.u32 %v766, 2147483648
    %v782 = vsel %vm780, %v781, %v779
    %v783 = vrsqrt.pop %v767
    %v784 = vmul.f32 %v767, %v783
    %vm785 = vcmp.eq.f32.partialorder %v767, inf
    %v786 = vsel %vm785, %v767, %v784
    %vm787 = vcmp.eq.f32.partialorder %v767, 0.0
    %v788 = vand.u32 %v767, 2147483648
    %v789 = vsel %vm787, %v788, %v786
    %v790 = vrsqrt.pop %v768
    %v791 = vmul.f32 %v768, %v790
    %vm792 = vcmp.eq.f32.partialorder %v768, inf
    %v793 = vsel %vm792, %v768, %v791
    %vm794 = vcmp.eq.f32.partialorder %v768, 0.0
    %v795 = vand.u32 %v768, 2147483648
    %v796 = vsel %vm794, %v795, %v793
    %801 = vrot.lane.b32.xlu0 %v775, 32
    %v802 = vpop.permute.xlu0 %801
    %803 = vrot.lane.b32.xlu0 %v782, 32
    %v804 = vpop.permute.xlu0 %803
    %805 = vrot.lane.b32.xlu0 %v789, 32
    %v806 = vpop.permute.xlu0 %805
    %807 = vrot.lane.b32.xlu0 %v796, 32
    %v808 = vpop.permute.xlu0 %807
    %v809 = vsel %vm425, %v802, %v804
    %v810 = vsel %vm425, %v806, %v808
    %v813 = vsub.f32 %v775, %v809
    %v814 = vsub.f32 %v789, %v810
    %v815 = vmul.f32 %v813, %v813
    %v816 = vmul.f32 %v814, %v814
    %v817 = vsel %vm437, %v815, 0.0
    %v818 = vsel %vm437, %v816, 0.0
    %v819 = vadd.f32 %v817, %v818
    %820 = vadd.xlane.f32.xlu0 %v819
    %v821 = vpop.xlane.xlu0 %820
    %v822 = vrot.slane %v821, 4
    %v823 = vadd.f32 %v821, %v822
    %v824 = vrot.slane %v823, 2
    %v825 = vadd.f32 %v823, %v824
    %v826 = vrot.slane %v825, 1
    %v827 = vadd.f32 %v825, %v826
    %s828 = vtos %v827
    %v829 = vstv %s828
    %830 = vst [vmem:[#allocation5] sm:$0xff] %v829
    // Predicated region
    $region18: #{tpu_custom_call.1} parent=1 // pred_check
      _
    $region19: #{tpu_custom_call.1} parent=1 // pred_check_branch
      %832 = sbr.rel (0) target = $region21
    $region20: #{tpu_custom_call.1} parent=1 // pred_region
      %s834 = ssub.s32 128, 128
      %835 = vsyncadd [#allocation4], %s834
      %s837 = sshll.u32 [#allocation5], 4
      %s838 = int_to_ptr.vmem [resolvable:$true] %s837
      %840 = dma.vmem_to_hbm [thread:$0]  %s838, 128, %s3, [#allocation4]
    $region21: #{tpu_custom_call.1} parent=1 // pred_fallthru
      _
    // Predicated region
    $region22: #{tpu_custom_call.1} parent=1 // pred_check
      _
    $region23: #{tpu_custom_call.1} parent=1 // pred_check_branch
      %842 = sbr.rel (0) target = $region25
    $region24: #{tpu_custom_call.1} parent=1 // pred_region
      %843 = dma.done [#allocation4], 128
    $region25: #{tpu_custom_call.1} parent=1 // pred_fallthru
      _
    %844 = vsyncpa [#allocation3], 1
    %845 = vsyncpa [#allocation4], 1

</llo_original>
